<compile_context>
chip_gen: v5e
topology: v5e:2x2
jax: 0.10.0
libtpu: 0.0.40
codegen_flags: <defaults>
</compile_context>

<pallas_src>
import jax
import jax.numpy as jnp
from jax import lax
from jax.experimental import pallas as pl
from jax.experimental.pallas import tpu as pltpu


def _instance_norm_bias_free_kernel(x_ref, w_ref, o_ref):
    # x_ref / o_ref: (bn, bc, hw) block.  w_ref: (bc, 1) f32 per-channel scales.
    hw = x_ref.shape[-1]
    inv_n = jnp.float32(1.0 / hw)
    eps = jnp.float32(1e-5)
    w = w_ref[...]  # (bc, 1) f32, hoisted out of the strip loop

    # Rolled strip loop over the leading block dim keeps f32 intermediates small
    # (one (bc, hw) strip at a time) even when the DMA block is several MiB.
    @pl.loop(0, x_ref.shape[0])
    def _(i):
        xf = x_ref[i].astype(jnp.float32)                     # (bc, hw) in f32
        # Two-pass (centered) variance in f32 for accuracy.
        mean = jnp.sum(xf, axis=-1, keepdims=True) * inv_n    # (bc, 1)
        d = xf - mean
        var = jnp.sum(d * d, axis=-1, keepdims=True) * inv_n  # (bc, 1)
        scale = lax.rsqrt(var + eps) * w                      # (bc, 1) f32
        # Bias-free: scale x itself (NOT x - mean); multiply in f32, cast once.
        o_ref[i] = (xf * scale).astype(o_ref.dtype)


def _pick_block_dims(N, C, hw, itemsize, *, block_target, strip_target):
    """Choose (bn, bc) block dims.

    bc (channels per block) must be a multiple of 8 or equal C; sized so a
    single (bc, hw) strip stays around `strip_target` bytes.  bn (batch rows per
    block) fills up to `block_target` bytes.  Partial tail blocks on either grid
    axis are handled by the cdiv grid.
    """
    row_bytes = hw * itemsize
    if C <= 8:
        bc = C
    else:
        want = strip_target // max(1, row_bytes)
        bc = int(min(max(8, (want // 8) * 8), (C // 8) * 8))
    bn = int(max(1, block_target // max(1, bc * row_bytes)))
    bn = int(min(bn, N))
    # Ensure >= 2 grid steps for v7x megacore sharding when the tensor is big
    # enough to care (tiny tensors: one step is cheapest).
    total_bytes = N * C * row_bytes
    while bn > 1 and pl.cdiv(N, bn) * pl.cdiv(C, bc) < 2 and total_bytes > (1 << 20):
        bn = max(1, bn // 2)
    # TODO(synk): for extremely large H*W (a single 8-row strip of several MiB),
    # add an hw-chunked strip reduction to cap the per-strip f32 footprint.
    return bn, bc


def instance_norm_bias_free(x, weight, *, block_target_bytes=None,
                            strip_target_bytes=512 * 1024):
    """x: (N, C, H, W); weight: (1, C, 1, 1). Returns same shape/dtype as x."""
    N, C, H, W = x.shape
    hw = H * W
    itemsize = x.dtype.itemsize

    # Generation-aware sizing: v7x has 64 MiB VMEM per TensorCore, v5e/v6e 128 MiB.
    try:
        vmem_cap = int(getattr(pltpu.get_tpu_info(), "vmem_capacity_bytes", 0) or 0)
    except Exception:  # pragma: no cover - be conservative if the query fails
        vmem_cap = 0
    small_vmem = vmem_cap <= 64 * 1024 * 1024  # unknown -> conservative
    if block_target_bytes is None:
        block_target_bytes = (4 if small_vmem else 8) * 1024 * 1024
    vmem_limit_bytes = (32 if small_vmem else 48) * 1024 * 1024

    bn, bc = _pick_block_dims(N, C, hw, itemsize,
                              block_target=block_target_bytes,
                              strip_target=strip_target_bytes)
    grid = (pl.cdiv(N, bn), pl.cdiv(C, bc))

    # Free reshape for contiguous NCHW: lane-dense (N, C, H*W) view.
    x3 = x.reshape(N, C, hw)
    # Per-channel scale as a tiny (C, 1) f32 column (blocked (bc, 1)).
    w2 = weight.reshape(C, 1).astype(jnp.float32)

    # Pure HBM streaming kernel: advertise its real cost to XLA.
    elems = N * C * hw
    cost = pl.CostEstimate(flops=6 * elems,
                           transcendentals=N * C,
                           bytes_accessed=2 * elems * itemsize + C * 4)

    out3 = pl.pallas_call(
        _instance_norm_bias_free_kernel,
        out_shape=jax.ShapeDtypeStruct((N, C, hw), x.dtype),
        grid_spec=pltpu.PrefetchScalarGridSpec(
            num_scalar_prefetch=0,
            grid=grid,
            in_specs=[
                pl.BlockSpec((bn, bc, hw), lambda i, j: (i, j, 0)),
                pl.BlockSpec((bc, 1), lambda i, j: (j, 0)),
            ],
            out_specs=pl.BlockSpec((bn, bc, hw), lambda i, j: (i, j, 0)),
        ),
        compiler_params=pltpu.CompilerParams(
            dimension_semantics=("parallel", "parallel"),
            vmem_limit_bytes=vmem_limit_bytes,
        ),
        cost_estimate=cost,
    )(x3, w2)

    return out3.reshape(N, C, H, W)


def _reference(x, weight):
    x32 = x.astype(jnp.float32)
    var = jnp.var(x32, axis=(2, 3), keepdims=True)  # population variance
    out = x32 / jnp.sqrt(var + 1e-5) * weight.astype(jnp.float32)
    return out.astype(x.dtype)


if __name__ == "__main__":
    key = jax.random.PRNGKey(0)
    kx, kw = jax.random.split(key)

    N, C, H, W = 2, 4, 16, 16
    x = jax.random.normal(kx, (N, C, H, W), dtype=jnp.float32)
    # Module init is ones; use a perturbed deterministic weight so the
    # per-channel scale path is actually exercised.
    weight = 1.0 + 0.1 * jax.random.normal(kw, (1, C, 1, 1), dtype=jnp.float32)

    out = jax.block_until_ready(instance_norm_bias_free(x, weight))
    ref = _reference(x, weight)

    assert out.shape == x.shape and out.dtype == x.dtype
    assert jnp.allclose(out, ref, atol=1e-5, rtol=1e-5), "mismatch vs reference"

    print("KERNEL_OK")
</pallas_src>

<mosaic_0001>
module attributes {stable_mosaic.version = 11 : i64} {
  func.func @_instance_norm_bias_free_kernel(%arg0: i32, %arg1: i32, %arg2: memref<2x4x256xf32, #tpu.memory_space<vmem>>, %arg3: memref<4x1xf32, #tpu.memory_space<vmem>>, %arg4: memref<2x4x256xf32, #tpu.memory_space<vmem>>) attributes {dimension_semantics = [#tpu.dimension_semantics<parallel>, #tpu.dimension_semantics<parallel>], iteration_bounds = array<i64: 1, 1>, scalar_prefetch = 0 : i64, scratch_operands = 0 : i64, tpu.core_type = #tpu.core_type<tc>, window_params = [{transform_indices = @transform_0, window_bounds = array<i64: 2, 4, 256>}, {transform_indices = @transform_1, window_bounds = array<i64: 4, 1>}, {transform_indices = @transform_2, window_bounds = array<i64: 2, 4, 256>}]} {
    %c0 = arith.constant 0 : index
    %c0_0 = arith.constant 0 : index
    %0 = vector.load %arg3[%c0, %c0_0] : memref<4x1xf32, #tpu.memory_space<vmem>>, vector<4x1xf32>
    %cst = arith.constant 3.906250e-03 : f32
    %cst_1 = arith.constant 9.99999974E-6 : f32
    %c0_i32 = arith.constant 0 : i32
    %c2_i32 = arith.constant 2 : i32
    %1 = arith.addi %c0_i32, %c2_i32 : i32
    %c1_i32 = arith.constant 1 : i32
    scf.for %arg5 = %c0_i32 to %1 step %c1_i32  : i32 {
      %c1_i32_3 = arith.constant 1 : i32
      %2 = arith.muli %arg5, %c1_i32_3 : i32
      %c0_i32_4 = arith.constant 0 : i32
      %3 = arith.addi %c0_i32_4, %2 : i32
      %4 = arith.index_cast %3 : i32 to index
      %c0_5 = arith.constant 0 : index
      %c0_6 = arith.constant 0 : index
      %5 = vector.load %arg2[%4, %c0_5, %c0_6] : memref<2x4x256xf32, #tpu.memory_space<vmem>>, vector<1x4x256xf32>
      %6 = vector.shape_cast %5 : vector<1x4x256xf32> to vector<4x256xf32>
      %cst_7 = arith.constant dense<0.000000e+00> : vector<4xf32>
      %7 = vector.multi_reduction <add>, %6, %cst_7 [1] : vector<4x256xf32> to vector<4xf32>
      %8 = vector.shape_cast %7 : vector<4xf32> to vector<4x1xf32>
      %9 = vector.broadcast %cst : f32 to vector<4x1xf32>
      %10 = arith.mulf %8, %9 : vector<4x1xf32>
      %11 = vector.broadcast %10 : vector<4x1xf32> to vector<4x256xf32>
      %12 = arith.subf %6, %11 : vector<4x256xf32>
      %13 = arith.mulf %12, %12 : vector<4x256xf32>
      %cst_8 = arith.constant dense<0.000000e+00> : vector<4xf32>
      %14 = vector.multi_reduction <add>, %13, %cst_8 [1] : vector<4x256xf32> to vector<4xf32>
      %15 = vector.shape_cast %14 : vector<4xf32> to vector<4x1xf32>
      %16 = vector.broadcast %cst : f32 to vector<4x1xf32>
      %17 = arith.mulf %15, %16 : vector<4x1xf32>
      %18 = vector.broadcast %cst_1 : f32 to vector<4x1xf32>
      %19 = arith.addf %17, %18 : vector<4x1xf32>
      %20 = math.rsqrt %19 : vector<4x1xf32>
      %21 = arith.mulf %20, %0 : vector<4x1xf32>
      %22 = vector.broadcast %21 : vector<4x1xf32> to vector<4x256xf32>
      %23 = arith.mulf %6, %22 : vector<4x256xf32>
      %24 = arith.index_cast %3 : i32 to index
      %c0_9 = arith.constant 0 : index
      %c0_10 = arith.constant 0 : index
      %25 = vector.load %arg4[%24, %c0_9, %c0_10] : memref<2x4x256xf32, #tpu.memory_space<vmem>>, vector<1x4x256xf32>
      %26 = vector.shape_cast %25 : vector<1x4x256xf32> to vector<4x256xf32>
      %27 = vector.shape_cast %23 : vector<4x256xf32> to vector<1x4x256xf32>
      tpu.vector_store %arg4[%24, %c0_9, %c0_10], %27 {strides = array<i32>} : memref<2x4x256xf32, #tpu.memory_space<vmem>>, vector<1x4x256xf32>,
    }
    %c2_i32_2 = arith.constant 2 : i32
    return
  }
  func.func @transform_0(%arg0: i32, %arg1: i32) -> (i32, i32, i32) {
    %c0_i32 = arith.constant 0 : i32
    %c0_i32_0 = arith.constant 0 : i32
    return %arg0, %arg1, %c0_i32 : i32, i32, i32
  }
  func.func @transform_1(%arg0: i32, %arg1: i32) -> (i32, i32) {
    %c0_i32 = arith.constant 0 : i32
    %c0_i32_0 = arith.constant 0 : i32
    return %arg1, %c0_i32 : i32, i32
  }
  func.func @transform_2(%arg0: i32, %arg1: i32) -> (i32, i32, i32) {
    %c0_i32 = arith.constant 0 : i32
    %c0_i32_0 = arith.constant 0 : i32
    return %arg0, %arg1, %c0_i32 : i32, i32, i32
  }
}

</mosaic_0001>

<llo_original>
// kernel: tpu_custom_call.1
$region0: #{tpu_custom_call.1}
  #allocation0 [shape = 'u32[]', space=smem, size = 0x4, offset = 0x4, fixed_abs, tag = 'smem constant byte address 0x4 - core index']
  #allocation1 [shape = 'u32[72,128]{1,0:T(1,128)}', space=vmem, size = 0x9000, scoped, tag = 'internal scratch']
  %s0 = inlined_call_operand.hbm [shape: f32[2,4,256], index: 0, kind: input, shape index: {}]
  %s1 = inlined_call_operand.vmem [shape: f32[4,1], index: 1, kind: input, shape index: {}]
  %s2 = inlined_call_operand.hbm [shape: f32[2,4,256], index: 2, kind: output, shape index: {}]
  %s3 = sld [smem:[#allocation0]]
  $region29: #{tpu_custom_call.1} parent=0
    _
  %s5 = ssub.s32 1, %s3
  %s6 = scalar_select 0, %s5, %s3
  $region1: #{tpu_custom_call.1} parent=0
    #allocation2 [shape = 'u8[8192]{0}', space=vmem, size = 0x2000, scoped, tag = 'input window, operand 0, single buffered']
    #allocation3 [shape = 's32[1]{0}', space=sflag, size = 0x4, scoped, tag = 'scoped memory for tpu_custom_call.1']
    #allocation4 [shape = 's32[1]{0}', space=sflag, size = 0x4, scoped, tag = 'scoped memory for tpu_custom_call.1']
    #allocation5 [shape = 'u8[8192]{0}', space=vmem, size = 0x2000, scoped, tag = 'output window, operand 0, single buffered']
    %7 = vsyncpa [#allocation3], 0
    %8 = vsyncpa [#allocation4], 0
    // Predicated region
    $region2: #{tpu_custom_call.1} parent=1 // pred_check
      _
    $region3: #{tpu_custom_call.1} parent=1 // pred_check_branch
      %10 = sbr.rel (0) target = $region5
    $region4: #{tpu_custom_call.1} parent=1 // pred_region
      %12 = vsyncadd [#allocation3], 0
      %s13 = sshll.u32 %s0, 4
      %s14 = int_to_ptr.hbm [resolvable:$true] %s13
      %s15 = sshll.u32 [#allocation2], 4
      %s16 = int_to_ptr.vmem [resolvable:$true] %s15
      %21 = dma.hbm_to_vmem [thread:$0]  %s14, 256, %s16, [#allocation3], 128, 128, 8
    $region5: #{tpu_custom_call.1} parent=1 // pred_fallthru
      _
    // Predicated region
    $region6: #{tpu_custom_call.1} parent=1 // pred_check
      _
    $region7: #{tpu_custom_call.1} parent=1 // pred_check_branch
      %23 = sbr.rel (0) target = $region9
    $region8: #{tpu_custom_call.1} parent=1 // pred_region
      _
    $region9: #{tpu_custom_call.1} parent=1 // pred_fallthru
      _
    // Predicated region
    $region10: #{tpu_custom_call.1} parent=1 // pred_check
      _
    $region11: #{tpu_custom_call.1} parent=1 // pred_check_branch
      %25 = sbr.rel (0) target = $region13
    $region12: #{tpu_custom_call.1} parent=1 // pred_region
      %27 = dma.done [#allocation3], 256
    $region13: #{tpu_custom_call.1} parent=1 // pred_fallthru
      _
    %v28 = vld [vmem:[%s1] sm:$0xf]
    loop: start=0, step=1, limit=2
    $region14: #{tpu_custom_call.1} parent=1 // loop_pre_header
      _
    $region15: #{tpu_custom_call.1} parent=1 // loop_header
      %s30 = sphi 0, %s34
      %p31 = scmp.ge.s32.totalorder %s30, 2
    $region16: #{tpu_custom_call.1} parent=1 // loop_header_branch
      %33 = sbr.rel (%p31) target = $region20
    $region17: #{tpu_custom_call.1} parent=1 // loop_body
      %s35 = smul.u32 %s30, 2
      %s36 = smul.addr %s35, 4
      %s37 = scalar_lea.vmem [#allocation2], %s36
      %v38 = vld [vmem:[%s37] sm:$0xff]
      %40 = vst [vmem:[#allocation1] ss:$2 sm:$0xff] %v38
      %v41 = vld.sshfl [vmem:[#allocation1] sm:$0xff pattern:$0x75316420]
      %v42 = vld.sshfl [vmem:[#allocation1 + $0x8] sm:$0xff pattern:$0x75316420]
      %vm45 = vcmask 1043456
      %v46 = vsel %vm45, %v41, 0.0
      %v47 = vsel %vm45, %v42, 0.0
      %v48 = vadd.f32 %v46, %v47
      %49 = vadd.xlane.f32.xlu0 %v48
      %v50 = vpop.xlane.xlu0 %49
      %v51 = vmul.f32 %v50, 0.00390625
      %v54 = vunpack.c.l.s4 839922192
      %v55 = vunpack.c.0.s8 %v54
      %v56 = vperm.slane %v51, %v55
      %v58 = vsub.f32 %v38, %v56
      %v59 = vmul.f32 %v58, %v58
      %61 = vst [vmem:[#allocation1] ss:$2 sm:$0xff] %v59
      %v62 = vld.sshfl [vmem:[#allocation1] sm:$0xff pattern:$0x75316420]
      %v63 = vld.sshfl [vmem:[#allocation1 + $0x8] sm:$0xff pattern:$0x75316420]
      %v66 = vsel %vm45, %v62, 0.0
      %v67 = vsel %vm45, %v63, 0.0
      %v68 = vadd.f32 %v66, %v67
      %69 = vadd.xlane.f32.xlu0 %v68
      %v70 = vpop.xlane.xlu0 %69
      %v71 = vmul.f32 %v70, 0.00390625
      %v72 = vadd.f32 %v71, 1e-05
      %v73 = vrsqrt.pop %v72
      %v74 = vmul.f32 %v73, %v72
      %v75 = vmul.f32 %v74, %v73
      %v76 = vmul.f32 0.5, %v75
      %v77 = vsub.f32 1.5, %v76
      %v78 = vmul.f32 %v73, %v77
      %vm79 = vweird.f32 %v72
      %vm80 = vweird.f32 %v73
      %vm81 = vmor %vm79, %vm80
      %v82 = vsel %vm81, %v73, %v78
      %v83 = vmul.f32 %v82, %v28
      %85 = vset.pattern.permute.xlu0 0
      %86 = vperm.xlu0 %85, %v83
      %v87 = vpop.permute.xlu0 %86
      %v89 = vunpack.c.l.s4 839922192
      %v90 = vunpack.c.0.s8 %v89
      %v91 = vperm.slane %v87, %v90
      %v93 = vmul.f32 %v38, %v91
      %s94 = smul.addr %s35, 4
      %s95 = scalar_lea.vmem [#allocation5], %s94
      %96 = vst [vmem:[%s95] sm:$0xff] %v93
    $region18: #{tpu_custom_call.1} parent=1 // loop_footer
      %s34 = sadd.s32 1, %s30
    $region19: #{tpu_custom_call.1} parent=1 // loop_footer_branch
      %29 = sbr.rel target = $region15
    $region20: #{tpu_custom_call.1} parent=1 // loop_exit
      _
    // Predicated region
    $region21: #{tpu_custom_call.1} parent=1 // pred_check
      _
    $region22: #{tpu_custom_call.1} parent=1 // pred_check_branch
      %98 = sbr.rel (0) target = $region24
    $region23: #{tpu_custom_call.1} parent=1 // pred_region
      %100 = vsyncadd [#allocation4], 0
      %s101 = sshll.u32 [#allocation5], 4
      %s102 = int_to_ptr.vmem [resolvable:$true] %s101
      %s103 = sshll.u32 %s2, 4
      %s104 = int_to_ptr.hbm [resolvable:$true] %s103
      %109 = dma.vmem_to_hbm [thread:$0]  %s102, 256, %s104, [#allocation4], 128, 128, 8
    $region24: #{tpu_custom_call.1} parent=1 // pred_fallthru
      _
    // Predicated region
    $region25: #{tpu_custom_call.1} parent=1 // pred_check
      _
    $region26: #{tpu_custom_call.1} parent=1 // pred_check_branch
      %111 = sbr.rel (0) target = $region28
    $region27: #{tpu_custom_call.1} parent=1 // pred_region
      %113 = dma.done [#allocation4], 256
    $region28: #{tpu_custom_call.1} parent=1 // pred_fallthru
      _
    %114 = vsyncpa [#allocation3], 1
    %115 = vsyncpa [#allocation4], 1

</llo_original>
